<compile_context>
chip_gen: v7x
topology: tpu7x:2x2x1
jax: 0.10.0
libtpu: 0.0.40
codegen_flags: <defaults>
</compile_context>

<pallas_src>
import jax
import jax.numpy as jnp
from jax.experimental import pallas as pl
from jax.experimental.pallas import tpu as pltpu


def class_embed_kernel(ids_ref, table_hbm, out_ref, sem):
    # ids_ref:   (B,) int32 in SMEM (scalar prefetch).
    # table_hbm: (n_classes, D) table left in HBM (memory_space=pl.ANY).
    # out_ref:   (B, D) VMEM output tile (sublane/lane dense).
    # sem:       (B,) DMA semaphores, one per gathered row.
    B = out_ref.shape[0]

    # Issue all B row gathers up front so their latencies overlap, then wait.
    copies = []
    for i in range(B):  # B is static; unrolled at trace time.
        cp = pltpu.make_async_copy(
            table_hbm.at[pl.ds(ids_ref[i], 1), :],  # one (1, D) row from HBM
            out_ref.at[pl.ds(i, 1), :],             # lands directly in output
            sem.at[i],
        )
        cp.start()
        copies.append(cp)
    for cp in copies:
        cp.wait()


def class_embedder_forward(class_ids, embedding_table):
    """Pallas equivalent of ClassEmbedder.forward.

    class_ids:        (B,) integer class indices in [0, n_classes)
    embedding_table:  (n_classes, embed_dim) float32
    returns:          (B, 1, embed_dim) float32
    """
    B = class_ids.shape[0]
    _, embed_dim = embedding_table.shape

    ids = class_ids.astype(jnp.int32)

    out2d = pl.pallas_call(
        class_embed_kernel,
        out_shape=jax.ShapeDtypeStruct((B, embed_dim), embedding_table.dtype),
        grid_spec=pltpu.PrefetchScalarGridSpec(
            num_scalar_prefetch=1,
            grid=(1,),  # single step: all gathers are concurrent manual DMAs
            in_specs=[
                # Table stays in HBM; rows are fetched by manual DMA.
                pl.BlockSpec(memory_space=pl.ANY),
            ],
            # Whole output as one (B, embed_dim) block: block == full array,
            # so the (8,128) divisibility rule is satisfied for any B, and
            # the writeback is a single unmasked, lane-dense store.
            out_specs=pl.BlockSpec((B, embed_dim), lambda i, ids: (0, 0)),
            scratch_shapes=[pltpu.SemaphoreType.DMA((B,))],
        ),
        compiler_params=pltpu.CompilerParams(
            # Single grid step -> nothing to shard across TensorCores.
            dimension_semantics=("arbitrary",),
        ),
    )(ids, embedding_table)

    # batch[key][:, None] -> embedding gives (B, 1, embed_dim); the unsqueeze
    # is a free metadata op outside the kernel.
    return out2d[:, None, :]


if __name__ == "__main__":
    key = jax.random.PRNGKey(0)
    k_table, k_ids = jax.random.split(key)

    n_classes = 1000          # module default
    embed_dim = 128
    batch_size = 8

    # nn.Embedding default init: weight ~ N(0, 1)
    embedding_table = jax.random.normal(
        k_table, (n_classes, embed_dim), dtype=jnp.float32
    )
    class_ids = jax.random.randint(
        k_ids, (batch_size,), minval=0, maxval=n_classes, dtype=jnp.int32
    )
    batch = {"class": class_ids}

    c = class_embedder_forward(batch["class"], embedding_table)
    c = jax.block_until_ready(c)

    # correctness check vs. plain JAX gather
    ref = embedding_table[class_ids][:, None, :]
    assert c.shape == (batch_size, 1, embed_dim), c.shape
    assert jnp.allclose(c, ref), "mismatch vs. reference embedding lookup"

    print("KERNEL_OK")
</pallas_src>

<mosaic_0001>
module attributes {stable_mosaic.version = 11 : i64} {
  func.func @class_embed_kernel(%arg0: i32, %arg1: memref<8xi32, #tpu.memory_space<smem>>, %arg2: memref<1000x128xf32, #tpu.memory_space<any>>, %arg3: memref<8x128xf32, #tpu.memory_space<vmem>>, %arg4: memref<8x!tpu.dma_semaphore, #tpu.memory_space<semaphore_mem>>) attributes {dimension_semantics = [#tpu.dimension_semantics<arbitrary>], iteration_bounds = array<i64: 1>, scalar_prefetch = 1 : i64, scratch_operands = 1 : i64, tpu.core_type = #tpu.core_type<tc>, window_params = [{}, {pipeline_mode = #tpu.pipeline_mode<synchronous>, transform_indices = @transform_1, window_bounds = array<i64: 8, 128>}]} {
    %c0 = arith.constant 0 : index
    %0 = memref.load %arg1[%c0] : memref<8xi32, #tpu.memory_space<smem>>
    %c0_i32 = arith.constant 0 : i32
    %c0_i32_0 = arith.constant 0 : i32
    %1 = tpu.memref_slice %arg2[%0, %c0_i32_0] : memref<1000x128xf32, #tpu.memory_space<any>> -> memref<1x128xf32, #tpu.memory_space<any>>
    %c0_i32_1 = arith.constant 0 : i32
    %c0_i32_2 = arith.constant 0 : i32
    %2 = tpu.memref_slice %arg3[%c0_i32_1, %c0_i32_2] : memref<8x128xf32, #tpu.memory_space<vmem>> -> memref<1x128xf32, #tpu.memory_space<vmem>>
    %3 = tpu.memref_slice %arg4[%c0_i32] : memref<8x!tpu.dma_semaphore, #tpu.memory_space<semaphore_mem>> -> memref<1x!tpu.dma_semaphore, #tpu.memory_space<semaphore_mem>>
    %4 = tpu.memref_squeeze %3 : memref<1x!tpu.dma_semaphore, #tpu.memory_space<semaphore_mem>> -> memref<!tpu.dma_semaphore, #tpu.memory_space<semaphore_mem>>
    tpu.enqueue_dma source(%1 : memref<1x128xf32, #tpu.memory_space<any>>) target(%2 : memref<1x128xf32, #tpu.memory_space<vmem>>) target_semaphore(%4 : memref<!tpu.dma_semaphore, #tpu.memory_space<semaphore_mem>>)
    %c1 = arith.constant 1 : index
    %5 = memref.load %arg1[%c1] : memref<8xi32, #tpu.memory_space<smem>>
    %c1_i32 = arith.constant 1 : i32
    %c0_i32_3 = arith.constant 0 : i32
    %6 = tpu.memref_slice %arg2[%5, %c0_i32_3] : memref<1000x128xf32, #tpu.memory_space<any>> -> memref<1x128xf32, #tpu.memory_space<any>>
    %c1_i32_4 = arith.constant 1 : i32
    %c0_i32_5 = arith.constant 0 : i32
    %7 = tpu.memref_slice %arg3[%c1_i32_4, %c0_i32_5] : memref<8x128xf32, #tpu.memory_space<vmem>> -> memref<1x128xf32, #tpu.memory_space<vmem>>
    %8 = tpu.memref_slice %arg4[%c1_i32] : memref<8x!tpu.dma_semaphore, #tpu.memory_space<semaphore_mem>> -> memref<1x!tpu.dma_semaphore, #tpu.memory_space<semaphore_mem>>
    %9 = tpu.memref_squeeze %8 : memref<1x!tpu.dma_semaphore, #tpu.memory_space<semaphore_mem>> -> memref<!tpu.dma_semaphore, #tpu.memory_space<semaphore_mem>>
    tpu.enqueue_dma source(%6 : memref<1x128xf32, #tpu.memory_space<any>>) target(%7 : memref<1x128xf32, #tpu.memory_space<vmem>>) target_semaphore(%9 : memref<!tpu.dma_semaphore, #tpu.memory_space<semaphore_mem>>)
    %c2 = arith.constant 2 : index
    %10 = memref.load %arg1[%c2] : memref<8xi32, #tpu.memory_space<smem>>
    %c2_i32 = arith.constant 2 : i32
    %c0_i32_6 = arith.constant 0 : i32
    %11 = tpu.memref_slice %arg2[%10, %c0_i32_6] : memref<1000x128xf32, #tpu.memory_space<any>> -> memref<1x128xf32, #tpu.memory_space<any>>
    %c2_i32_7 = arith.constant 2 : i32
    %c0_i32_8 = arith.constant 0 : i32
    %12 = tpu.memref_slice %arg3[%c2_i32_7, %c0_i32_8] : memref<8x128xf32, #tpu.memory_space<vmem>> -> memref<1x128xf32, #tpu.memory_space<vmem>>
    %13 = tpu.memref_slice %arg4[%c2_i32] : memref<8x!tpu.dma_semaphore, #tpu.memory_space<semaphore_mem>> -> memref<1x!tpu.dma_semaphore, #tpu.memory_space<semaphore_mem>>
    %14 = tpu.memref_squeeze %13 : memref<1x!tpu.dma_semaphore, #tpu.memory_space<semaphore_mem>> -> memref<!tpu.dma_semaphore, #tpu.memory_space<semaphore_mem>>
    tpu.enqueue_dma source(%11 : memref<1x128xf32, #tpu.memory_space<any>>) target(%12 : memref<1x128xf32, #tpu.memory_space<vmem>>) target_semaphore(%14 : memref<!tpu.dma_semaphore, #tpu.memory_space<semaphore_mem>>)
    %c3 = arith.constant 3 : index
    %15 = memref.load %arg1[%c3] : memref<8xi32, #tpu.memory_space<smem>>
    %c3_i32 = arith.constant 3 : i32
    %c0_i32_9 = arith.constant 0 : i32
    %16 = tpu.memref_slice %arg2[%15, %c0_i32_9] : memref<1000x128xf32, #tpu.memory_space<any>> -> memref<1x128xf32, #tpu.memory_space<any>>
    %c3_i32_10 = arith.constant 3 : i32
    %c0_i32_11 = arith.constant 0 : i32
    %17 = tpu.memref_slice %arg3[%c3_i32_10, %c0_i32_11] : memref<8x128xf32, #tpu.memory_space<vmem>> -> memref<1x128xf32, #tpu.memory_space<vmem>>
    %18 = tpu.memref_slice %arg4[%c3_i32] : memref<8x!tpu.dma_semaphore, #tpu.memory_space<semaphore_mem>> -> memref<1x!tpu.dma_semaphore, #tpu.memory_space<semaphore_mem>>
    %19 = tpu.memref_squeeze %18 : memref<1x!tpu.dma_semaphore, #tpu.memory_space<semaphore_mem>> -> memref<!tpu.dma_semaphore, #tpu.memory_space<semaphore_mem>>
    tpu.enqueue_dma source(%16 : memref<1x128xf32, #tpu.memory_space<any>>) target(%17 : memref<1x128xf32, #tpu.memory_space<vmem>>) target_semaphore(%19 : memref<!tpu.dma_semaphore, #tpu.memory_space<semaphore_mem>>)
    %c4 = arith.constant 4 : index
    %20 = memref.load %arg1[%c4] : memref<8xi32, #tpu.memory_space<smem>>
    %c4_i32 = arith.constant 4 : i32
    %c0_i32_12 = arith.constant 0 : i32
    %21 = tpu.memref_slice %arg2[%20, %c0_i32_12] : memref<1000x128xf32, #tpu.memory_space<any>> -> memref<1x128xf32, #tpu.memory_space<any>>
    %c4_i32_13 = arith.constant 4 : i32
    %c0_i32_14 = arith.constant 0 : i32
    %22 = tpu.memref_slice %arg3[%c4_i32_13, %c0_i32_14] : memref<8x128xf32, #tpu.memory_space<vmem>> -> memref<1x128xf32, #tpu.memory_space<vmem>>
    %23 = tpu.memref_slice %arg4[%c4_i32] : memref<8x!tpu.dma_semaphore, #tpu.memory_space<semaphore_mem>> -> memref<1x!tpu.dma_semaphore, #tpu.memory_space<semaphore_mem>>
    %24 = tpu.memref_squeeze %23 : memref<1x!tpu.dma_semaphore, #tpu.memory_space<semaphore_mem>> -> memref<!tpu.dma_semaphore, #tpu.memory_space<semaphore_mem>>
    tpu.enqueue_dma source(%21 : memref<1x128xf32, #tpu.memory_space<any>>) target(%22 : memref<1x128xf32, #tpu.memory_space<vmem>>) target_semaphore(%24 : memref<!tpu.dma_semaphore, #tpu.memory_space<semaphore_mem>>)
    %c5 = arith.constant 5 : index
    %25 = memref.load %arg1[%c5] : memref<8xi32, #tpu.memory_space<smem>>
    %c5_i32 = arith.constant 5 : i32
    %c0_i32_15 = arith.constant 0 : i32
    %26 = tpu.memref_slice %arg2[%25, %c0_i32_15] : memref<1000x128xf32, #tpu.memory_space<any>> -> memref<1x128xf32, #tpu.memory_space<any>>
    %c5_i32_16 = arith.constant 5 : i32
    %c0_i32_17 = arith.constant 0 : i32
    %27 = tpu.memref_slice %arg3[%c5_i32_16, %c0_i32_17] : memref<8x128xf32, #tpu.memory_space<vmem>> -> memref<1x128xf32, #tpu.memory_space<vmem>>
    %28 = tpu.memref_slice %arg4[%c5_i32] : memref<8x!tpu.dma_semaphore, #tpu.memory_space<semaphore_mem>> -> memref<1x!tpu.dma_semaphore, #tpu.memory_space<semaphore_mem>>
    %29 = tpu.memref_squeeze %28 : memref<1x!tpu.dma_semaphore, #tpu.memory_space<semaphore_mem>> -> memref<!tpu.dma_semaphore, #tpu.memory_space<semaphore_mem>>
    tpu.enqueue_dma source(%26 : memref<1x128xf32, #tpu.memory_space<any>>) target(%27 : memref<1x128xf32, #tpu.memory_space<vmem>>) target_semaphore(%29 : memref<!tpu.dma_semaphore, #tpu.memory_space<semaphore_mem>>)
    %c6 = arith.constant 6 : index
    %30 = memref.load %arg1[%c6] : memref<8xi32, #tpu.memory_space<smem>>
    %c6_i32 = arith.constant 6 : i32
    %c0_i32_18 = arith.constant 0 : i32
    %31 = tpu.memref_slice %arg2[%30, %c0_i32_18] : memref<1000x128xf32, #tpu.memory_space<any>> -> memref<1x128xf32, #tpu.memory_space<any>>
    %c6_i32_19 = arith.constant 6 : i32
    %c0_i32_20 = arith.constant 0 : i32
    %32 = tpu.memref_slice %arg3[%c6_i32_19, %c0_i32_20] : memref<8x128xf32, #tpu.memory_space<vmem>> -> memref<1x128xf32, #tpu.memory_space<vmem>>
    %33 = tpu.memref_slice %arg4[%c6_i32] : memref<8x!tpu.dma_semaphore, #tpu.memory_space<semaphore_mem>> -> memref<1x!tpu.dma_semaphore, #tpu.memory_space<semaphore_mem>>
    %34 = tpu.memref_squeeze %33 : memref<1x!tpu.dma_semaphore, #tpu.memory_space<semaphore_mem>> -> memref<!tpu.dma_semaphore, #tpu.memory_space<semaphore_mem>>
    tpu.enqueue_dma source(%31 : memref<1x128xf32, #tpu.memory_space<any>>) target(%32 : memref<1x128xf32, #tpu.memory_space<vmem>>) target_semaphore(%34 : memref<!tpu.dma_semaphore, #tpu.memory_space<semaphore_mem>>)
    %c7 = arith.constant 7 : index
    %35 = memref.load %arg1[%c7] : memref<8xi32, #tpu.memory_space<smem>>
    %c7_i32 = arith.constant 7 : i32
    %c0_i32_21 = arith.constant 0 : i32
    %36 = tpu.memref_slice %arg2[%35, %c0_i32_21] : memref<1000x128xf32, #tpu.memory_space<any>> -> memref<1x128xf32, #tpu.memory_space<any>>
    %c7_i32_22 = arith.constant 7 : i32
    %c0_i32_23 = arith.constant 0 : i32
    %37 = tpu.memref_slice %arg3[%c7_i32_22, %c0_i32_23] : memref<8x128xf32, #tpu.memory_space<vmem>> -> memref<1x128xf32, #tpu.memory_space<vmem>>
    %38 = tpu.memref_slice %arg4[%c7_i32] : memref<8x!tpu.dma_semaphore, #tpu.memory_space<semaphore_mem>> -> memref<1x!tpu.dma_semaphore, #tpu.memory_space<semaphore_mem>>
    %39 = tpu.memref_squeeze %38 : memref<1x!tpu.dma_semaphore, #tpu.memory_space<semaphore_mem>> -> memref<!tpu.dma_semaphore, #tpu.memory_space<semaphore_mem>>
    tpu.enqueue_dma source(%36 : memref<1x128xf32, #tpu.memory_space<any>>) target(%37 : memref<1x128xf32, #tpu.memory_space<vmem>>) target_semaphore(%39 : memref<!tpu.dma_semaphore, #tpu.memory_space<semaphore_mem>>)
    %c0_i32_24 = arith.constant 0 : i32
    %c0_i32_25 = arith.constant 0 : i32
    %40 = tpu.memref_slice %arg2[%0, %c0_i32_25] : memref<1000x128xf32, #tpu.memory_space<any>> -> memref<1x128xf32, #tpu.memory_space<any>>
    %c0_i32_26 = arith.constant 0 : i32
    %c0_i32_27 = arith.constant 0 : i32
    %41 = tpu.memref_slice %arg3[%c0_i32_26, %c0_i32_27] : memref<8x128xf32, #tpu.memory_space<vmem>> -> memref<1x128xf32, #tpu.memory_space<vmem>>
    %42 = tpu.memref_slice %arg4[%c0_i32_24] : memref<8x!tpu.dma_semaphore, #tpu.memory_space<semaphore_mem>> -> memref<1x!tpu.dma_semaphore, #tpu.memory_space<semaphore_mem>>
    %43 = tpu.memref_squeeze %42 : memref<1x!tpu.dma_semaphore, #tpu.memory_space<semaphore_mem>> -> memref<!tpu.dma_semaphore, #tpu.memory_space<semaphore_mem>>
    tpu.wait_dma2 semaphore(%43 : memref<!tpu.dma_semaphore, #tpu.memory_space<semaphore_mem>>) src(%40 : memref<1x128xf32, #tpu.memory_space<any>>) dst(%41 : memref<1x128xf32, #tpu.memory_space<vmem>>)
    %c1_i32_28 = arith.constant 1 : i32
    %c0_i32_29 = arith.constant 0 : i32
    %44 = tpu.memref_slice %arg2[%5, %c0_i32_29] : memref<1000x128xf32, #tpu.memory_space<any>> -> memref<1x128xf32, #tpu.memory_space<any>>
    %c1_i32_30 = arith.constant 1 : i32
    %c0_i32_31 = arith.constant 0 : i32
    %45 = tpu.memref_slice %arg3[%c1_i32_30, %c0_i32_31] : memref<8x128xf32, #tpu.memory_space<vmem>> -> memref<1x128xf32, #tpu.memory_space<vmem>>
    %46 = tpu.memref_slice %arg4[%c1_i32_28] : memref<8x!tpu.dma_semaphore, #tpu.memory_space<semaphore_mem>> -> memref<1x!tpu.dma_semaphore, #tpu.memory_space<semaphore_mem>>
    %47 = tpu.memref_squeeze %46 : memref<1x!tpu.dma_semaphore, #tpu.memory_space<semaphore_mem>> -> memref<!tpu.dma_semaphore, #tpu.memory_space<semaphore_mem>>
    tpu.wait_dma2 semaphore(%47 : memref<!tpu.dma_semaphore, #tpu.memory_space<semaphore_mem>>) src(%44 : memref<1x128xf32, #tpu.memory_space<any>>) dst(%45 : memref<1x128xf32, #tpu.memory_space<vmem>>)
    %c2_i32_32 = arith.constant 2 : i32
    %c0_i32_33 = arith.constant 0 : i32
    %48 = tpu.memref_slice %arg2[%10, %c0_i32_33] : memref<1000x128xf32, #tpu.memory_space<any>> -> memref<1x128xf32, #tpu.memory_space<any>>
    %c2_i32_34 = arith.constant 2 : i32
    %c0_i32_35 = arith.constant 0 : i32
    %49 = tpu.memref_slice %arg3[%c2_i32_34, %c0_i32_35] : memref<8x128xf32, #tpu.memory_space<vmem>> -> memref<1x128xf32, #tpu.memory_space<vmem>>
    %50 = tpu.memref_slice %arg4[%c2_i32_32] : memref<8x!tpu.dma_semaphore, #tpu.memory_space<semaphore_mem>> -> memref<1x!tpu.dma_semaphore, #tpu.memory_space<semaphore_mem>>
    %51 = tpu.memref_squeeze %50 : memref<1x!tpu.dma_semaphore, #tpu.memory_space<semaphore_mem>> -> memref<!tpu.dma_semaphore, #tpu.memory_space<semaphore_mem>>
    tpu.wait_dma2 semaphore(%51 : memref<!tpu.dma_semaphore, #tpu.memory_space<semaphore_mem>>) src(%48 : memref<1x128xf32, #tpu.memory_space<any>>) dst(%49 : memref<1x128xf32, #tpu.memory_space<vmem>>)
    %c3_i32_36 = arith.constant 3 : i32
    %c0_i32_37 = arith.constant 0 : i32
    %52 = tpu.memref_slice %arg2[%15, %c0_i32_37] : memref<1000x128xf32, #tpu.memory_space<any>> -> memref<1x128xf32, #tpu.memory_space<any>>
    %c3_i32_38 = arith.constant 3 : i32
    %c0_i32_39 = arith.constant 0 : i32
    %53 = tpu.memref_slice %arg3[%c3_i32_38, %c0_i32_39] : memref<8x128xf32, #tpu.memory_space<vmem>> -> memref<1x128xf32, #tpu.memory_space<vmem>>
    %54 = tpu.memref_slice %arg4[%c3_i32_36] : memref<8x!tpu.dma_semaphore, #tpu.memory_space<semaphore_mem>> -> memref<1x!tpu.dma_semaphore, #tpu.memory_space<semaphore_mem>>
    %55 = tpu.memref_squeeze %54 : memref<1x!tpu.dma_semaphore, #tpu.memory_space<semaphore_mem>> -> memref<!tpu.dma_semaphore, #tpu.memory_space<semaphore_mem>>
    tpu.wait_dma2 semaphore(%55 : memref<!tpu.dma_semaphore, #tpu.memory_space<semaphore_mem>>) src(%52 : memref<1x128xf32, #tpu.memory_space<any>>) dst(%53 : memref<1x128xf32, #tpu.memory_space<vmem>>)
    %c4_i32_40 = arith.constant 4 : i32
    %c0_i32_41 = arith.constant 0 : i32
    %56 = tpu.memref_slice %arg2[%20, %c0_i32_41] : memref<1000x128xf32, #tpu.memory_space<any>> -> memref<1x128xf32, #tpu.memory_space<any>>
    %c4_i32_42 = arith.constant 4 : i32
    %c0_i32_43 = arith.constant 0 : i32
    %57 = tpu.memref_slice %arg3[%c4_i32_42, %c0_i32_43] : memref<8x128xf32, #tpu.memory_space<vmem>> -> memref<1x128xf32, #tpu.memory_space<vmem>>
    %58 = tpu.memref_slice %arg4[%c4_i32_40] : memref<8x!tpu.dma_semaphore, #tpu.memory_space<semaphore_mem>> -> memref<1x!tpu.dma_semaphore, #tpu.memory_space<semaphore_mem>>
    %59 = tpu.memref_squeeze %58 : memref<1x!tpu.dma_semaphore, #tpu.memory_space<semaphore_mem>> -> memref<!tpu.dma_semaphore, #tpu.memory_space<semaphore_mem>>
    tpu.wait_dma2 semaphore(%59 : memref<!tpu.dma_semaphore, #tpu.memory_space<semaphore_mem>>) src(%56 : memref<1x128xf32, #tpu.memory_space<any>>) dst(%57 : memref<1x128xf32, #tpu.memory_space<vmem>>)
    %c5_i32_44 = arith.constant 5 : i32
    %c0_i32_45 = arith.constant 0 : i32
    %60 = tpu.memref_slice %arg2[%25, %c0_i32_45] : memref<1000x128xf32, #tpu.memory_space<any>> -> memref<1x128xf32, #tpu.memory_space<any>>
    %c5_i32_46 = arith.constant 5 : i32
    %c0_i32_47 = arith.constant 0 : i32
    %61 = tpu.memref_slice %arg3[%c5_i32_46, %c0_i32_47] : memref<8x128xf32, #tpu.memory_space<vmem>> -> memref<1x128xf32, #tpu.memory_space<vmem>>
    %62 = tpu.memref_slice %arg4[%c5_i32_44] : memref<8x!tpu.dma_semaphore, #tpu.memory_space<semaphore_mem>> -> memref<1x!tpu.dma_semaphore, #tpu.memory_space<semaphore_mem>>
    %63 = tpu.memref_squeeze %62 : memref<1x!tpu.dma_semaphore, #tpu.memory_space<semaphore_mem>> -> memref<!tpu.dma_semaphore, #tpu.memory_space<semaphore_mem>>
    tpu.wait_dma2 semaphore(%63 : memref<!tpu.dma_semaphore, #tpu.memory_space<semaphore_mem>>) src(%60 : memref<1x128xf32, #tpu.memory_space<any>>) dst(%61 : memref<1x128xf32, #tpu.memory_space<vmem>>)
    %c6_i32_48 = arith.constant 6 : i32
    %c0_i32_49 = arith.constant 0 : i32
    %64 = tpu.memref_slice %arg2[%30, %c0_i32_49] : memref<1000x128xf32, #tpu.memory_space<any>> -> memref<1x128xf32, #tpu.memory_space<any>>
    %c6_i32_50 = arith.constant 6 : i32
    %c0_i32_51 = arith.constant 0 : i32
    %65 = tpu.memref_slice %arg3[%c6_i32_50, %c0_i32_51] : memref<8x128xf32, #tpu.memory_space<vmem>> -> memref<1x128xf32, #tpu.memory_space<vmem>>
    %66 = tpu.memref_slice %arg4[%c6_i32_48] : memref<8x!tpu.dma_semaphore, #tpu.memory_space<semaphore_mem>> -> memref<1x!tpu.dma_semaphore, #tpu.memory_space<semaphore_mem>>
    %67 = tpu.memref_squeeze %66 : memref<1x!tpu.dma_semaphore, #tpu.memory_space<semaphore_mem>> -> memref<!tpu.dma_semaphore, #tpu.memory_space<semaphore_mem>>
    tpu.wait_dma2 semaphore(%67 : memref<!tpu.dma_semaphore, #tpu.memory_space<semaphore_mem>>) src(%64 : memref<1x128xf32, #tpu.memory_space<any>>) dst(%65 : memref<1x128xf32, #tpu.memory_space<vmem>>)
    %c7_i32_52 = arith.constant 7 : i32
    %c0_i32_53 = arith.constant 0 : i32
    %68 = tpu.memref_slice %arg2[%35, %c0_i32_53] : memref<1000x128xf32, #tpu.memory_space<any>> -> memref<1x128xf32, #tpu.memory_space<any>>
    %c7_i32_54 = arith.constant 7 : i32
    %c0_i32_55 = arith.constant 0 : i32
    %69 = tpu.memref_slice %arg3[%c7_i32_54, %c0_i32_55] : memref<8x128xf32, #tpu.memory_space<vmem>> -> memref<1x128xf32, #tpu.memory_space<vmem>>
    %70 = tpu.memref_slice %arg4[%c7_i32_52] : memref<8x!tpu.dma_semaphore, #tpu.memory_space<semaphore_mem>> -> memref<1x!tpu.dma_semaphore, #tpu.memory_space<semaphore_mem>>
    %71 = tpu.memref_squeeze %70 : memref<1x!tpu.dma_semaphore, #tpu.memory_space<semaphore_mem>> -> memref<!tpu.dma_semaphore, #tpu.memory_space<semaphore_mem>>
    tpu.wait_dma2 semaphore(%71 : memref<!tpu.dma_semaphore, #tpu.memory_space<semaphore_mem>>) src(%68 : memref<1x128xf32, #tpu.memory_space<any>>) dst(%69 : memref<1x128xf32, #tpu.memory_space<vmem>>)
    return
  }
  func.func @transform_1(%arg0: i32, %arg1: memref<8xi32, #tpu.memory_space<smem>>) -> (i32, i32) {
    %c0_i32 = arith.constant 0 : i32
    %c0_i32_0 = arith.constant 0 : i32
    %c0_i32_1 = arith.constant 0 : i32
    return %c0_i32, %c0_i32_0 : i32, i32
  }
}

</mosaic_0001>

<llo_original>
// kernel: tpu_custom_call.1
$region0: #{tpu_custom_call.1}
  #allocation0 [shape = 'u32[]', space=smem, size = 0x4, offset = 0x4, fixed_abs, tag = 'smem constant byte address 0x4 - core index']
  #allocation1 [shape = 'u32[144,128]{1,0:T(1,128)}', space=vmem, size = 0x12000, scoped, tag = 'internal scratch']
  #allocation2 [shape = 's32[8]{0}', space=sflag, size = 0x20, scoped, tag = 'scratch operand']
  #allocation3 [shape = 's32[1]{0}', space=sflag, size = 0x4, scoped, tag = 'scoped memory for tpu_custom_call.1']
  #allocation4 [shape = 'u8[512]{0}', space=smem, size = 0x200, scoped, tag = 'prefetched SMEM operand 0']
  #allocation7 [shape = 's32[]', space=sflag, size = 0x4, offset = 0, fixed_abs, tag = 'sflag constant byte address 0x0 - dummy sync flag']
  #allocation8 [shape = 's32[]', space=sflag, size = 0x4, offset = 0, fixed_abs, tag = 'sflag constant byte address 0x0 - dummy sync flag']
  #allocation9 [shape = 'u32[]', space=smem, size = 0x4, offset = 0x44, fixed_abs, tag = 'smem constant byte address 0x44 - assertion arg 0']
  #allocation10 [shape = 'u32[]', space=smem, size = 0x4, offset = 0x48, fixed_abs, tag = 'smem constant byte address 0x48 - assertion arg 1']
  #allocation11 [shape = 's32[]', space=sflag, size = 0x4, offset = 0, fixed_abs, tag = 'sflag constant byte address 0x0 - dummy sync flag']
  #allocation12 [shape = 's32[]', space=sflag, size = 0x4, offset = 0, fixed_abs, tag = 'sflag constant byte address 0x0 - dummy sync flag']
  #allocation13 [shape = 's32[]', space=sflag, size = 0x4, offset = 0, fixed_abs, tag = 'sflag constant byte address 0x0 - dummy sync flag']
  #allocation14 [shape = 's32[]', space=sflag, size = 0x4, offset = 0, fixed_abs, tag = 'sflag constant byte address 0x0 - dummy sync flag']
  #allocation15 [shape = 's32[]', space=sflag, size = 0x4, offset = 0, fixed_abs, tag = 'sflag constant byte address 0x0 - dummy sync flag']
  #allocation16 [shape = 's32[]', space=sflag, size = 0x4, offset = 0, fixed_abs, tag = 'sflag constant byte address 0x0 - dummy sync flag']
  #allocation17 [shape = 's32[]', space=sflag, size = 0x4, offset = 0, fixed_abs, tag = 'sflag constant byte address 0x0 - dummy sync flag']
  #allocation18 [shape = 's32[]', space=sflag, size = 0x4, offset = 0, fixed_abs, tag = 'sflag constant byte address 0x0 - dummy sync flag']
  #allocation19 [shape = 's32[]', space=sflag, size = 0x4, offset = 0, fixed_abs, tag = 'sflag constant byte address 0x0 - dummy sync flag']
  #allocation20 [shape = 's32[]', space=sflag, size = 0x4, offset = 0, fixed_abs, tag = 'sflag constant byte address 0x0 - dummy sync flag']
  #allocation21 [shape = 's32[]', space=sflag, size = 0x4, offset = 0, fixed_abs, tag = 'sflag constant byte address 0x0 - dummy sync flag']
  #allocation22 [shape = 's32[]', space=sflag, size = 0x4, offset = 0, fixed_abs, tag = 'sflag constant byte address 0x0 - dummy sync flag']
  #allocation23 [shape = 's32[]', space=sflag, size = 0x4, offset = 0, fixed_abs, tag = 'sflag constant byte address 0x0 - dummy sync flag']
  #allocation24 [shape = 's32[]', space=sflag, size = 0x4, offset = 0, fixed_abs, tag = 'sflag constant byte address 0x0 - dummy sync flag']
  %s0 = inlined_call_operand.hbm [shape: s32[8], index: 0, kind: input, shape index: {}]
  %s1 = inlined_call_operand.hbm [shape: f32[1000,128], index: 1, kind: input, shape index: {}]
  %s2 = inlined_call_operand.hbm [shape: f32[8,128], index: 2, kind: output, shape index: {}]
  %s3 = sld [smem:[#allocation0]]
  $region42: #{tpu_custom_call.1} parent=0
    _
  %s5 = ssub.s32 1, %s3
  %s6 = scalar_select 0, %s5, %s3
  %8 = dma.hbm_to_smem %s0, 16, [#allocation4], [#allocation3]
  %9 = dma.done [#allocation3], 16
  %10 = sfence
  $region1: #{tpu_custom_call.1} parent=0
    #allocation5 [shape = 'u8[4096]{0}', space=vmem, size = 0x1000, scoped, tag = 'output window, operand 0, single buffered']
    #allocation6 [shape = 's32[1]{0}', space=sflag, size = 0x4, scoped, tag = 'scoped memory for tpu_custom_call.1']
    %11 = vsyncpa [#allocation6], 0
    %s12 = sld [smem:[#allocation4]]
    %s13 = smul.addr %s12, 16
    %s14 = scalar_lea.hbm %s1, %s13
    // Predicated region
    $region2: #{tpu_custom_call.1} parent=1 // pred_check
      _
    $region3: #{tpu_custom_call.1} parent=1 // pred_check_branch
      %16 = sbr.rel target = $region5
    $region4: #{tpu_custom_call.1} parent=1 // pred_region
      %17 = sst [smem:[#allocation9]] [#allocation8]
      %18 = sst [smem:[#allocation10]] [#allocation7]
    $region5: #{tpu_custom_call.1} parent=1 // pred_fallthru
      _
    %20 = shalt.err (0)
    %s22 = sshll.u32 [#allocation5], 4
    %s23 = int_to_ptr.vmem [resolvable:$true] %s22
    %25 = dma.hbm_to_vmem [thread:$0]  %s14, 16, %s23, [#allocation2]
    %s26 = sld [smem:[#allocation4 + $0x1]]
    %s27 = smul.addr %s26, 16
    %s28 = scalar_lea.hbm %s1, %s27
    %s29 = scalar_lea.vmem [#allocation5], 1
    %s30 = scalar_lea.sflag [#allocation2], 1
    // Predicated region
    $region6: #{tpu_custom_call.1} parent=1 // pred_check
      _
    $region7: #{tpu_custom_call.1} parent=1 // pred_check_branch
      %32 = sbr.rel target = $region9
    $region8: #{tpu_custom_call.1} parent=1 // pred_region
      %33 = sst [smem:[#allocation9]] [#allocation12]
      %34 = sst [smem:[#allocation10]] [#allocation11]
    $region9: #{tpu_custom_call.1} parent=1 // pred_fallthru
      _
    %36 = shalt.err (0)
    %s38 = sshll.u32 %s29, 4
    %s39 = int_to_ptr.vmem [resolvable:$true] %s38
    %41 = dma.hbm_to_vmem [thread:$0]  %s28, 16, %s39, %s30
    %s42 = sld [smem:[#allocation4 + $0x2]]
    %s43 = smul.addr %s42, 16
    %s44 = scalar_lea.hbm %s1, %s43
    %s45 = scalar_lea.vmem [#allocation5], 2
    %s46 = scalar_lea.sflag [#allocation2], 2
    // Predicated region
    $region10: #{tpu_custom_call.1} parent=1 // pred_check
      _
    $region11: #{tpu_custom_call.1} parent=1 // pred_check_branch
      %48 = sbr.rel target = $region13
    $region12: #{tpu_custom_call.1} parent=1 // pred_region
      %49 = sst [smem:[#allocation9]] [#allocation14]
      %50 = sst [smem:[#allocation10]] [#allocation13]
    $region13: #{tpu_custom_call.1} parent=1 // pred_fallthru
      _
    %52 = shalt.err (0)
    %s54 = sshll.u32 %s45, 4
    %s55 = int_to_ptr.vmem [resolvable:$true] %s54
    %57 = dma.hbm_to_vmem [thread:$0]  %s44, 16, %s55, %s46
    %s58 = sld [smem:[#allocation4 + $0x3]]
    %s59 = smul.addr %s58, 16
    %s60 = scalar_lea.hbm %s1, %s59
    %s61 = scalar_lea.vmem [#allocation5], 3
    %s62 = scalar_lea.sflag [#allocation2], 3
    // Predicated region
    $region14: #{tpu_custom_call.1} parent=1 // pred_check
      _
    $region15: #{tpu_custom_call.1} parent=1 // pred_check_branch
      %64 = sbr.rel target = $region17
    $region16: #{tpu_custom_call.1} parent=1 // pred_region
      %65 = sst [smem:[#allocation9]] [#allocation16]
      %66 = sst [smem:[#allocation10]] [#allocation15]
    $region17: #{tpu_custom_call.1} parent=1 // pred_fallthru
      _
    %68 = shalt.err (0)
    %s70 = sshll.u32 %s61, 4
    %s71 = int_to_ptr.vmem [resolvable:$true] %s70
    %73 = dma.hbm_to_vmem [thread:$0]  %s60, 16, %s71, %s62
    %s74 = sld [smem:[#allocation4 + $0x4]]
    %s75 = smul.addr %s74, 16
    %s76 = scalar_lea.hbm %s1, %s75
    %s77 = scalar_lea.vmem [#allocation5], 4
    %s78 = scalar_lea.sflag [#allocation2], 4
    // Predicated region
    $region18: #{tpu_custom_call.1} parent=1 // pred_check
      _
    $region19: #{tpu_custom_call.1} parent=1 // pred_check_branch
      %80 = sbr.rel target = $region21
    $region20: #{tpu_custom_call.1} parent=1 // pred_region
      %81 = sst [smem:[#allocation9]] [#allocation18]
      %82 = sst [smem:[#allocation10]] [#allocation17]
    $region21: #{tpu_custom_call.1} parent=1 // pred_fallthru
      _
    %84 = shalt.err (0)
    %s86 = sshll.u32 %s77, 4
    %s87 = int_to_ptr.vmem [resolvable:$true] %s86
    %89 = dma.hbm_to_vmem [thread:$0]  %s76, 16, %s87, %s78
    %s90 = sld [smem:[#allocation4 + $0x5]]
    %s91 = smul.addr %s90, 16
    %s92 = scalar_lea.hbm %s1, %s91
    %s93 = scalar_lea.vmem [#allocation5], 5
    %s94 = scalar_lea.sflag [#allocation2], 5
    // Predicated region
    $region22: #{tpu_custom_call.1} parent=1 // pred_check
      _
    $region23: #{tpu_custom_call.1} parent=1 // pred_check_branch
      %96 = sbr.rel target = $region25
    $region24: #{tpu_custom_call.1} parent=1 // pred_region
      %97 = sst [smem:[#allocation9]] [#allocation20]
      %98 = sst [smem:[#allocation10]] [#allocation19]
    $region25: #{tpu_custom_call.1} parent=1 // pred_fallthru
      _
    %100 = shalt.err (0)
    %s102 = sshll.u32 %s93, 4
    %s103 = int_to_ptr.vmem [resolvable:$true] %s102
    %105 = dma.hbm_to_vmem [thread:$0]  %s92, 16, %s103, %s94
    %s106 = sld [smem:[#allocation4 + $0x6]]
    %s107 = smul.addr %s106, 16
    %s108 = scalar_lea.hbm %s1, %s107
    %s109 = scalar_lea.vmem [#allocation5], 6
    %s110 = scalar_lea.sflag [#allocation2], 6
    // Predicated region
    $region26: #{tpu_custom_call.1} parent=1 // pred_check
      _
    $region27: #{tpu_custom_call.1} parent=1 // pred_check_branch
      %112 = sbr.rel target = $region29
    $region28: #{tpu_custom_call.1} parent=1 // pred_region
      %113 = sst [smem:[#allocation9]] [#allocation22]
      %114 = sst [smem:[#allocation10]] [#allocation21]
    $region29: #{tpu_custom_call.1} parent=1 // pred_fallthru
      _
    %116 = shalt.err (0)
    %s118 = sshll.u32 %s109, 4
    %s119 = int_to_ptr.vmem [resolvable:$true] %s118
    %121 = dma.hbm_to_vmem [thread:$0]  %s108, 16, %s119, %s110
    %s122 = sld [smem:[#allocation4 + $0x7]]
    %s123 = smul.addr %s122, 16
    %s124 = scalar_lea.hbm %s1, %s123
    %s125 = scalar_lea.vmem [#allocation5], 7
    %s126 = scalar_lea.sflag [#allocation2], 7
    // Predicated region
    $region30: #{tpu_custom_call.1} parent=1 // pred_check
      _
    $region31: #{tpu_custom_call.1} parent=1 // pred_check_branch
      %128 = sbr.rel target = $region33
    $region32: #{tpu_custom_call.1} parent=1 // pred_region
      %129 = sst [smem:[#allocation9]] [#allocation24]
      %130 = sst [smem:[#allocation10]] [#allocation23]
    $region33: #{tpu_custom_call.1} parent=1 // pred_fallthru
      _
    %132 = shalt.err (0)
    %s134 = sshll.u32 %s125, 4
    %s135 = int_to_ptr.vmem [resolvable:$true] %s134
    %137 = dma.hbm_to_vmem [thread:$0]  %s124, 16, %s135, %s126
    %s138 = smul.u32 1, 1
    %s139 = sshll.u32 %s138, 4
    %140 = dma.done [#allocation2], %s139
    %s141 = sshll.u32 %s138, 4
    %142 = dma.done %s30, %s141
    %s143 = sshll.u32 %s138, 4
    %144 = dma.done %s46, %s143
    %s145 = sshll.u32 %s138, 4
    %146 = dma.done %s62, %s145
    %s147 = sshll.u32 %s138, 4
    %148 = dma.done %s78, %s147
    %s149 = sshll.u32 %s138, 4
    %150 = dma.done %s94, %s149
    %s151 = sshll.u32 %s138, 4
    %152 = dma.done %s110, %s151
    %s153 = sshll.u32 %s138, 4
    %154 = dma.done %s126, %s153
    // Predicated region
    $region34: #{tpu_custom_call.1} parent=1 // pred_check
      _
    $region35: #{tpu_custom_call.1} parent=1 // pred_check_branch
      %156 = sbr.rel (0) target = $region37
    $region36: #{tpu_custom_call.1} parent=1 // pred_region
      %s158 = ssub.s32 128, 128
      %159 = vsyncadd [#allocation6], %s158
      %s161 = sshll.u32 [#allocation5], 4
      %s162 = int_to_ptr.vmem [resolvable:$true] %s161
      %164 = dma.vmem_to_hbm [thread:$0]  %s162, 128, %s2, [#allocation6]
    $region37: #{tpu_custom_call.1} parent=1 // pred_fallthru
      _
    // Predicated region
    $region38: #{tpu_custom_call.1} parent=1 // pred_check
      _
    $region39: #{tpu_custom_call.1} parent=1 // pred_check_branch
      %166 = sbr.rel (0) target = $region41
    $region40: #{tpu_custom_call.1} parent=1 // pred_region
      %167 = dma.done [#allocation6], 128
    $region41: #{tpu_custom_call.1} parent=1 // pred_fallthru
      _
    %168 = vsyncpa [#allocation6], 1
  %169 = vsyncmov [#allocation2]
  %s170 = vpop.sfrf %169
  %p171 = scmp.eq.s32.totalorder %s170, 0
  %p172 = pneg %p171
  %174 = shalt.err (%p172)
  %s175 = scalar_lea.sflag [#allocation2], 1
  %176 = vsyncmov %s175
  %s177 = vpop.sfrf %176
  %p178 = scmp.eq.s32.totalorder %s177, 0
  %p179 = pneg %p178
  %181 = shalt.err (%p179)
  %s182 = scalar_lea.sflag [#allocation2], 2
  %183 = vsyncmov %s182
  %s184 = vpop.sfrf %183
  %p185 = scmp.eq.s32.totalorder %s184, 0
  %p186 = pneg %p185
  %188 = shalt.err (%p186)
  %s189 = scalar_lea.sflag [#allocation2], 3
  %190 = vsyncmov %s189
  %s191 = vpop.sfrf %190
  %p192 = scmp.eq.s32.totalorder %s191, 0
  %p193 = pneg %p192
  %195 = shalt.err (%p193)
  %s196 = scalar_lea.sflag [#allocation2], 4
  %197 = vsyncmov %s196
  %s198 = vpop.sfrf %197
  %p199 = scmp.eq.s32.totalorder %s198, 0
  %p200 = pneg %p199
  %202 = shalt.err (%p200)
  %s203 = scalar_lea.sflag [#allocation2], 5
  %204 = vsyncmov %s203
  %s205 = vpop.sfrf %204
  %p206 = scmp.eq.s32.totalorder %s205, 0
  %p207 = pneg %p206
  %209 = shalt.err (%p207)
  %s210 = scalar_lea.sflag [#allocation2], 6
  %211 = vsyncmov %s210
  %s212 = vpop.sfrf %211
  %p213 = scmp.eq.s32.totalorder %s212, 0
  %p214 = pneg %p213
  %216 = shalt.err (%p214)
  %s217 = scalar_lea.sflag [#allocation2], 7
  %218 = vsyncmov %s217
  %s219 = vpop.sfrf %218
  %p220 = scmp.eq.s32.totalorder %s219, 0
  %p221 = pneg %p220
  %223 = shalt.err (%p221)

</llo_original>
